<compile_context>
chip_gen: v6e
topology: v6e:2x2x1
jax: 0.10.0
libtpu: 0.0.40
codegen_flags: <defaults>
</compile_context>

<pallas_src>
import math

import jax
import jax.numpy as jnp
from jax.experimental import pallas as pl
from jax.experimental.pallas import tpu as pltpu


def build_positional_encoding(d_model: int, max_seq_len: int = 20) -> jnp.ndarray:
    """Reproduces the PyTorch __init__ pe buffer (float32, shape (max_seq_len, d_model))."""
    position = jnp.arange(0, max_seq_len, dtype=jnp.float32)[:, None]  # (L, 1)
    div_term = jnp.exp(
        jnp.arange(0, d_model, 2, dtype=jnp.float32) * (-math.log(10000.0) / d_model)
    )
    pe = jnp.zeros((max_seq_len, d_model), dtype=jnp.float32)
    if d_model % 2 != 0:
        div_sin = div_term[: d_model // 2 + 1]
        pe = pe.at[:, 0::2].set(jnp.sin(position * div_sin))
        pe = pe.at[:, 1::2].set(jnp.cos(position * div_term[: d_model // 2]))
    else:
        pe = pe.at[:, 0::2].set(jnp.sin(position * div_term))
        pe = pe.at[:, 1::2].set(jnp.cos(position * div_term))
    return pe  # (max_seq_len, d_model)


def _add_pe_kernel(x_ref, pe_ref, o_ref):
    # x_ref: (tb, tl) activation block; pe_ref: (1, tl) positional slab.
    # Promote x to the output dtype (PyTorch promotion), broadcast-add pe.
    o_ref[...] = x_ref[...].astype(o_ref.dtype) + pe_ref[...]


def _choose_tiles(B: int, sd: int, per_elem_bytes: int, sublane_pack: int,
                  target_block_bytes: int):
    """Pick (tb, tl): batch rows and lane elements per block.

    Guarantees (TPU tiling legality):
      * tb is a multiple of `sublane_pack` (>= 8) or equals B,
      * tl is a multiple of 128 or equals sd,
      * tb * tl * per_elem_bytes stays near target_block_bytes.
    """
    max_elems = max(1, target_block_bytes // per_elem_bytes)

    # Case 1: the whole array fits in one block.
    if B * sd <= max_elems:
        return B, sd

    # Case 2: a sublane-pack worth of full rows fits -> tile the batch axis only.
    if sd * sublane_pack <= max_elems:
        tb = min(B, ((max_elems // sd) // sublane_pack) * sublane_pack)
        return tb, sd

    # Case 3: rows are wide -> keep a small, legal batch tile and tile the lane axis.
    tb = B if B <= sublane_pack else sublane_pack
    if sd <= 128:
        tl = sd
    else:
        tl = min(sd, max(128, ((max_elems // tb) // 128) * 128))
    return tb, tl


def positional_encoding_forward(x: jnp.ndarray, pe: jnp.ndarray, *,
                                min_pallas_bytes: int = 128 * 1024,
                                target_block_bytes: int = 2 << 20) -> jnp.ndarray:
    """Equivalent of PositionalEncoding.forward.

    x: (B, S, D) or (S, D).  pe: (max_seq_len, D).
    Returns (B, S, D) in jnp.result_type(x, pe) (matches PyTorch promotion).
    """
    if x.ndim == 2:
        x = x[None, :, :]
    if x.ndim != 3:
        raise ValueError(f"expected 2-D or 3-D input, got shape {x.shape}")
    B, S, D = x.shape
    max_seq_len, d_model = pe.shape
    if S > max_seq_len:
        raise ValueError(f"sequence length {S} exceeds max_seq_len {max_seq_len}")
    if D != d_model:
        raise ValueError(f"feature dim {D} does not match pe d_model {d_model}")

    out_dtype = jnp.result_type(x.dtype, pe.dtype)
    pe_slice = pe[:S, :].astype(out_dtype)

    sd = S * D
    x_itemsize = jnp.dtype(x.dtype).itemsize
    out_itemsize = jnp.dtype(out_dtype).itemsize
    total_out_bytes = B * sd * out_itemsize

    # Tiny-input bypass: the nominal model shapes are a few KB; kernel launch /
    # DMA overhead dominates, so let XLA fuse the add with neighboring ops.
    if total_out_bytes < min_pallas_bytes:
        return x.astype(out_dtype) + pe_slice[None, :, :]

    # Lane-dense layout: flatten (S, D) into one wide trailing axis.
    x_flat = x.reshape(B, sd)
    pe_flat = pe_slice.reshape(1, sd)

    sublane_pack = 8 * max(1, 4 // max(1, x_itemsize))  # 8 f32 / 16 bf16 / 32 int8
    tb, tl = _choose_tiles(B, sd, x_itemsize + out_itemsize, sublane_pack,
                           target_block_bytes)

    # sd tiles on the OUTER axis, batch tiles inner: pe's block index is constant
    # along the inner axis, so pe is DMA'd exactly once per sd tile.
    grid = (pl.cdiv(sd, tl), pl.cdiv(B, tb))

    # Double-buffered x + out + pe blocks.  Only raise the scoped-VMEM limit if a
    # caller asks for big blocks (e.g. 4-8 MiB targets on v6e/v7x).
    est_vmem = 2 * (tb * tl * (x_itemsize + out_itemsize) + tl * out_itemsize)
    vmem_limit = None
    if est_vmem > (12 << 20):
        vmem_limit = int(min(64 << 20, max(2 * est_vmem, 32 << 20)))

    out_flat = pl.pallas_call(
        _add_pe_kernel,
        out_shape=jax.ShapeDtypeStruct((B, sd), out_dtype),
        grid_spec=pltpu.PrefetchScalarGridSpec(
            num_scalar_prefetch=0,
            grid=grid,
            in_specs=[
                pl.BlockSpec((tb, tl), lambda l, b: (b, l)),   # activations
                pl.BlockSpec((1, tl), lambda l, b: (0, l)),    # pe slab (reused over batch)
            ],
            out_specs=pl.BlockSpec((tb, tl), lambda l, b: (b, l)),
        ),
        compiler_params=pltpu.CompilerParams(
            dimension_semantics=("parallel", "parallel"),  # shards across v7x's 2 TCs
            vmem_limit_bytes=vmem_limit,
        ),
    )(x_flat, pe_flat)

    return out_flat.reshape(B, S, D)


if __name__ == "__main__":
    MAX_SEQ_LEN = 20
    key = jax.random.PRNGKey(0)

    # --- 1) Nominal small shape, force the Pallas path (single-block case). ---
    B, S, D = 2, 8, 32
    x = jax.random.normal(key, (B, S, D), dtype=jnp.float32)
    pe = build_positional_encoding(D, MAX_SEQ_LEN)

    out = jax.block_until_ready(
        positional_encoding_forward(x, pe, min_pallas_bytes=0))
    ref = x + pe[None, :S, :]
    assert out.shape == (B, S, D)
    assert jnp.allclose(out, ref, atol=1e-6), "pallas path mismatch"

    # --- 2) Default tiny-input bypass (plain-JAX fused path). ---
    out_bypass = jax.block_until_ready(positional_encoding_forward(x, pe))
    assert jnp.allclose(out_bypass, ref, atol=1e-6), "bypass path mismatch"

    # --- 3) 2-D input path (torch's unsqueeze(0) branch). ---
    x2d = x[0]
    out2d = jax.block_until_ready(
        positional_encoding_forward(x2d, pe, min_pallas_bytes=0))
    assert out2d.shape == (1, S, D)
    assert jnp.allclose(out2d[0], x2d + pe[:S, :], atol=1e-6), "2D path mismatch"

    # --- 4) Tiled path: small byte target forces a ragged 2-D grid
    #        (lane-axis tiling + non-multiple-of-8 batch remainder). ---
    B2, S2, D2 = 10, 20, 24
    key2 = jax.random.PRNGKey(0)
    x_big = jax.random.normal(key2, (B2, S2, D2), dtype=jnp.float32)
    pe2 = build_positional_encoding(D2, MAX_SEQ_LEN)
    out_big = jax.block_until_ready(
        positional_encoding_forward(x_big, pe2, min_pallas_bytes=0,
                                    target_block_bytes=8 * 1024))
    ref_big = x_big + pe2[None, :S2, :]
    assert jnp.allclose(out_big, ref_big, atol=1e-6), "tiled path mismatch"

    # --- 5) Mixed precision: bf16 x + f32 pe -> f32 out (PyTorch promotion). ---
    x_bf16 = jax.random.normal(jax.random.PRNGKey(1), (4, 16, 32),
                               dtype=jnp.bfloat16)
    pe3 = build_positional_encoding(32, MAX_SEQ_LEN)
    out_bf = jax.block_until_ready(
        positional_encoding_forward(x_bf16, pe3, min_pallas_bytes=0))
    assert out_bf.dtype == jnp.float32
    ref_bf = x_bf16.astype(jnp.float32) + pe3[None, :16, :]
    assert jnp.allclose(out_bf, ref_bf, atol=1e-5), "bf16 promotion mismatch"

    print("KERNEL_OK")
</pallas_src>

<mosaic_0001>
module attributes {stable_mosaic.version = 11 : i64} {
  func.func @_add_pe_kernel(%arg0: i32, %arg1: i32, %arg2: memref<2x256xf32, #tpu.memory_space<vmem>>, %arg3: memref<1x256xf32, #tpu.memory_space<vmem>>, %arg4: memref<2x256xf32, #tpu.memory_space<vmem>>) attributes {dimension_semantics = [#tpu.dimension_semantics<parallel>, #tpu.dimension_semantics<parallel>], iteration_bounds = array<i64: 1, 1>, scalar_prefetch = 0 : i64, scratch_operands = 0 : i64, tpu.core_type = #tpu.core_type<tc>, window_params = [{transform_indices = @transform_0, window_bounds = array<i64: 2, 256>}, {transform_indices = @transform_1, window_bounds = array<i64: 1, 256>}, {transform_indices = @transform_2, window_bounds = array<i64: 2, 256>}]} {
    %c0 = arith.constant 0 : index
    %c0_0 = arith.constant 0 : index
    %0 = vector.load %arg2[%c0, %c0_0] : memref<2x256xf32, #tpu.memory_space<vmem>>, vector<2x256xf32>
    %c0_1 = arith.constant 0 : index
    %c0_2 = arith.constant 0 : index
    %1 = vector.load %arg3[%c0_1, %c0_2] : memref<1x256xf32, #tpu.memory_space<vmem>>, vector<1x256xf32>
    %2 = vector.broadcast %1 : vector<1x256xf32> to vector<2x256xf32>
    %3 = arith.addf %0, %2 : vector<2x256xf32>
    %c0_3 = arith.constant 0 : index
    %c0_4 = arith.constant 0 : index
    %4 = vector.load %arg4[%c0_3, %c0_4] : memref<2x256xf32, #tpu.memory_space<vmem>>, vector<2x256xf32>
    tpu.vector_store %arg4[%c0_3, %c0_4], %3 {strides = array<i32>} : memref<2x256xf32, #tpu.memory_space<vmem>>, vector<2x256xf32>,
    return
  }
  func.func @transform_0(%arg0: i32, %arg1: i32) -> (i32, i32) {
    %c0_i32 = arith.constant 0 : i32
    return %arg1, %arg0 : i32, i32
  }
  func.func @transform_1(%arg0: i32, %arg1: i32) -> (i32, i32) {
    %c0_i32 = arith.constant 0 : i32
    %c0_i32_0 = arith.constant 0 : i32
    return %c0_i32, %arg0 : i32, i32
  }
  func.func @transform_2(%arg0: i32, %arg1: i32) -> (i32, i32) {
    %c0_i32 = arith.constant 0 : i32
    return %arg1, %arg0 : i32, i32
  }
}

</mosaic_0001>

<llo_original>
// kernel: tpu_custom_call.1
$region0: #{tpu_custom_call.1}
  #allocation0 [shape = 'u32[]', space=smem, size = 0x4, offset = 0x4, fixed_abs, tag = 'smem constant byte address 0x4 - core index']
  #allocation1 [shape = 'u32[144,128]{1,0:T(1,128)}', space=vmem, size = 0x12000, scoped, tag = 'internal scratch']
  %s0 = inlined_call_operand.hbm [shape: f32[2,256], index: 0, kind: input, shape index: {}]
  %s1 = inlined_call_operand.hbm [shape: f32[1,256], index: 1, kind: input, shape index: {}]
  %s2 = inlined_call_operand.hbm [shape: f32[2,256], index: 2, kind: output, shape index: {}]
  %s3 = sld [smem:[#allocation0]]
  $region26: #{tpu_custom_call.1} parent=0
    _
  %s5 = ssub.s32 1, %s3
  %s6 = scalar_select 0, %s5, %s3
  $region1: #{tpu_custom_call.1} parent=0
    #allocation2 [shape = 'u8[2048]{0}', space=vmem, size = 0x800, scoped, tag = 'input window, operand 0, single buffered']
    #allocation3 [shape = 's32[1]{0}', space=sflag, size = 0x4, scoped, tag = 'scoped memory for tpu_custom_call.1']
    #allocation4 [shape = 's32[1]{0}', space=sflag, size = 0x4, scoped, tag = 'scoped memory for tpu_custom_call.1']
    #allocation5 [shape = 'u8[1024]{0}', space=vmem, size = 0x400, scoped, tag = 'input window, operand 1, single buffered']
    #allocation6 [shape = 's32[1]{0}', space=sflag, size = 0x4, scoped, tag = 'scoped memory for tpu_custom_call.1']
    #allocation7 [shape = 'u8[2048]{0}', space=vmem, size = 0x800, scoped, tag = 'output window, operand 0, single buffered']
    %7 = vsyncpa [#allocation3], 0
    %8 = vsyncpa [#allocation6], 0
    %9 = vsyncpa [#allocation4], 0
    // Predicated region
    $region2: #{tpu_custom_call.1} parent=1 // pred_check
      _
    $region3: #{tpu_custom_call.1} parent=1 // pred_check_branch
      %11 = sbr.rel (0) target = $region5
    $region4: #{tpu_custom_call.1} parent=1 // pred_region
      %s13 = ssub.s32 64, 64
      %14 = vsyncadd [#allocation3], %s13
      %s16 = sshll.u32 [#allocation2], 4
      %s17 = int_to_ptr.vmem [resolvable:$true] %s16
      %19 = dma.hbm_to_vmem [thread:$0]  %s0, 64, %s17, [#allocation3]
    $region5: #{tpu_custom_call.1} parent=1 // pred_fallthru
      _
    // Predicated region
    $region6: #{tpu_custom_call.1} parent=1 // pred_check
      _
    $region7: #{tpu_custom_call.1} parent=1 // pred_check_branch
      %21 = sbr.rel (0) target = $region9
    $region8: #{tpu_custom_call.1} parent=1 // pred_region
      %s23 = ssub.s32 32, 32
      %24 = vsyncadd [#allocation6], %s23
      %s26 = sshll.u32 [#allocation5], 4
      %s27 = int_to_ptr.vmem [resolvable:$true] %s26
      %29 = dma.hbm_to_vmem [thread:$0]  %s1, 32, %s27, [#allocation6]
    $region9: #{tpu_custom_call.1} parent=1 // pred_fallthru
      _
    // Predicated region
    $region10: #{tpu_custom_call.1} parent=1 // pred_check
      _
    $region11: #{tpu_custom_call.1} parent=1 // pred_check_branch
      %31 = sbr.rel (0) target = $region13
    $region12: #{tpu_custom_call.1} parent=1 // pred_region
      %32 = dma.done [#allocation3], 64
    $region13: #{tpu_custom_call.1} parent=1 // pred_fallthru
      _
    // Predicated region
    $region14: #{tpu_custom_call.1} parent=1 // pred_check
      _
    $region15: #{tpu_custom_call.1} parent=1 // pred_check_branch
      %34 = sbr.rel (0) target = $region17
    $region16: #{tpu_custom_call.1} parent=1 // pred_region
      %35 = dma.done [#allocation6], 32
    $region17: #{tpu_custom_call.1} parent=1 // pred_fallthru
      _
    %v36 = vld [vmem:[#allocation2] sm:$0xf]
    %v37 = vld [vmem:[#allocation5] sm:$0x3]
    %v39 = vlaneseq
    %v40 = vshrl.u32 %v39, 7
    %v41 = vsub.s32 0, %v40
    %v42 = vrot.slane %v37, %v41
    %v43 = vlaneseq
    %v44 = vshrl.u32 %v43, 7
    %v45 = vsub.s32 1, %v44
    %v46 = vrot.slane %v37, %v45
    %v47 = vcombine.low %v42, %v46
    %v49 = vunpack.c.l.s4 1983009808
    %v50 = vunpack.c.0.s8 %v49
    %v51 = vlaneseq
    %v52 = vshrl.u32 %v51, 7
    %v53 = vsub.s32 %v50, %v52
    %v54 = vrot.slane %v47, %v53
    %v56 = vadd.f32 %v36, %v54
    %57 = vst [vmem:[#allocation7] sm:$0xf] %v56
    // Predicated region
    $region18: #{tpu_custom_call.1} parent=1 // pred_check
      _
    $region19: #{tpu_custom_call.1} parent=1 // pred_check_branch
      %59 = sbr.rel (0) target = $region21
    $region20: #{tpu_custom_call.1} parent=1 // pred_region
      %s61 = ssub.s32 64, 64
      %62 = vsyncadd [#allocation4], %s61
      %s64 = sshll.u32 [#allocation7], 4
      %s65 = int_to_ptr.vmem [resolvable:$true] %s64
      %67 = dma.vmem_to_hbm [thread:$0]  %s65, 64, %s2, [#allocation4]
    $region21: #{tpu_custom_call.1} parent=1 // pred_fallthru
      _
    // Predicated region
    $region22: #{tpu_custom_call.1} parent=1 // pred_check
      _
    $region23: #{tpu_custom_call.1} parent=1 // pred_check_branch
      %69 = sbr.rel (0) target = $region25
    $region24: #{tpu_custom_call.1} parent=1 // pred_region
      %70 = dma.done [#allocation4], 64
    $region25: #{tpu_custom_call.1} parent=1 // pred_fallthru
      _
    %71 = vsyncpa [#allocation3], 1
    %72 = vsyncpa [#allocation6], 1
    %73 = vsyncpa [#allocation4], 1

</llo_original>
